<compile_context>
chip_gen: v7x
topology: tpu7x:2x2x1
jax: 0.10.0
libtpu: 0.0.40
codegen_flags: <defaults>
</compile_context>

<pallas_src>
import functools

import jax
import jax.numpy as jnp
from jax.experimental import pallas as pl
from jax.experimental.pallas import tpu as pltpu


# ----------------------------------------------------------------------------
# Kernel
# ----------------------------------------------------------------------------
def _residual_block_kernel(x_ref, w1l_ref, w1m_ref, w1r_ref,
                           w2l_ref, w2m_ref, w2r_ref, sh_ref, o_ref,
                           *, seq_len, has_downsample, cout_p):
    """Flat (rows, C) block containing whole length-L sequences.

    x      : (rows, Cin_p)  f32     rows = (#batch elems in block) * seq_len
    w1l/r  : (Cin_p, Cout_p) bf16   conv1 taps l-1 / l+1, BN+bias folded
    w1m    : (Cin_p, Cout_p) or (Cin_p, 2*Cout_p) bf16
             middle tap; when has_downsample the extra Cout_p lanes are the
             folded 1x1 downsample weights (fused matmul).
    w2l/m/r: (Cout_p, Cout_p) bf16  conv2 taps
    sh     : (8, Cout_p) f32        row 0 = shift1, row 1 = shift2(+shift_d)
    out    : (rows, Cout_p) f32
    """
    x = x_ref[...]                                  # (rows, Cin_p) f32
    rows = x.shape[0]

    # Position of each row inside its length-L sequence.  Blocks always hold
    # whole sequences, so rows wrapping under the circular roll are exactly the
    # rows zeroed for 'same' padding.
    pos = jax.lax.broadcasted_iota(jnp.int32, (rows, 1), 0) % seq_len
    is_first = pos == 0
    is_last = pos == (seq_len - 1)

    def conv3_parts(v, wl_ref, wm_ref, wr_ref):
        # v: (rows, C) f32.  Three accumulating MXU dots; bf16 operands,
        # f32 accumulation.  Returns (mid_acc, side_acc).
        n = v.shape[0]
        zero = jnp.zeros_like(v)
        left = jnp.where(is_first, zero, pltpu.roll(v, 1, 0)).astype(jnp.bfloat16)
        right = jnp.where(is_last, zero, pltpu.roll(v, n - 1, 0)).astype(jnp.bfloat16)
        vb = v.astype(jnp.bfloat16)
        mid = jnp.dot(vb, wm_ref[...], preferred_element_type=jnp.float32)
        side = (jnp.dot(left, wl_ref[...], preferred_element_type=jnp.float32)
                + jnp.dot(right, wr_ref[...], preferred_element_type=jnp.float32))
        return mid, side

    # conv1 (+ fused 1x1 downsample) + bn1 + relu
    mid1, side1 = conv3_parts(x, w1l_ref, w1m_ref, w1r_ref)
    if has_downsample:                              # static (trace-time) branch
        h = mid1[:, :cout_p] + side1
        res = mid1[:, cout_p:]                      # downsample conv output
    else:
        h = mid1 + side1
        res = x                                     # identity (Cin == Cout)
    h = jnp.maximum(h + sh_ref[0:1, :], 0.0)

    # conv2 + bn2, residual add (bn2 + downsample-bn shifts pre-combined), relu
    mid2, side2 = conv3_parts(h, w2l_ref, w2m_ref, w2r_ref)
    out = mid2 + side2 + res + sh_ref[1:2, :]
    o_ref[...] = jnp.maximum(out, 0.0).astype(o_ref.dtype)


# ----------------------------------------------------------------------------
# Wrapper (all folding / padding / layout is trace-time algebra)
# ----------------------------------------------------------------------------
def _round_up(n, m):
    return ((n + m - 1) // m) * m


def _fold_conv_bn(w, b, gamma, beta, mean, var, eps):
    """Fold Conv1d bias + eval-mode BatchNorm1d into weight + per-channel shift."""
    s = gamma * jax.lax.rsqrt(var + eps)            # (Cout,)
    w_f = w * s[:, None, None]                      # (Cout, Cin, K)
    shift = b * s + beta - mean * s                 # (Cout,)
    return w_f, shift


def _vmem_budget_and_limit():
    """Generation-aware (block budget, compiler vmem limit) in bytes."""
    cap = 64 << 20                                  # conservative default
    try:
        cap = int(pltpu.get_tpu_info().vmem_capacity_bytes)
    except Exception:
        pass
    if cap <= (64 << 20):                           # v7x: 64 MiB per TensorCore
        return 20 << 20, 48 << 20
    return 32 << 20, 96 << 20                       # v5e / v6e: 128 MiB physical


def _choose_batch_per_block(B, L, cin_p, cout_p, wcols, budget_bytes,
                            weight_bytes):
    """Largest #whole batch elems per grid step fitting the VMEM budget.

    Prefers >=2 grid steps (DMA/compute overlap) and an even number of steps
    (v7x splits the 'parallel' axis across 2 TensorCores)."""
    def layout_ok(nb):                 # (8,128) rule: rows % 8 == 0 or full dim
        return nb == B or (nb * L) % 8 == 0

    def fits(nb):
        rows = nb * L
        # double-buffered x / out blocks (f32)
        io = 2 * rows * cin_p * 4 + 2 * rows * cout_p * 4
        # in-kernel intermediates: bf16 taps for both convs + f32 accumulators
        inter = rows * (3 * cin_p * 2 + 3 * cout_p * 2
                        + (wcols + 3 * cout_p) * 4)
        return io + inter + weight_bytes <= budget_bytes

    candidates = [nb for nb in range(1, B + 1)
                  if B % nb == 0 and layout_ok(nb) and fits(nb)]
    if not candidates:
        # TODO(synk): L-tiled halo fallback; a single sequence may still exceed
        #             the budget here (vmem_limit_bytes gives some headroom).
        return 1 if layout_ok(1) else B
    multi = [nb for nb in candidates if B // nb >= 2]
    if multi:
        even = [nb for nb in multi if (B // nb) % 2 == 0]
        pool = even if even else multi
        return max(pool)
    return max(candidates)


def residual_block_forward(x_ncl, params, *, vmem_budget_bytes=None):
    """x_ncl: (B, Cin, L) float32 (PyTorch NCL layout). Returns (B, Cout, L)."""
    eps = params["eps"]
    B, Cin, L = x_ncl.shape
    Cout = params["w1"].shape[0]
    has_down = "wd" in params

    cin_p = _round_up(Cin, 128)
    cout_p = _round_up(Cout, 128)
    if not has_down:
        assert Cin == Cout and cin_p == cout_p

    # ---- fold bias + BN, split taps, pad channels, cast weights to bf16 -----
    w1f, sh1 = _fold_conv_bn(params["w1"], params["b1"], params["g1"],
                             params["be1"], params["m1"], params["v1"], eps)
    w2f, sh2 = _fold_conv_bn(params["w2"], params["b2"], params["g2"],
                             params["be2"], params["m2"], params["v2"], eps)

    def pack_tap(wf, k, cin_pad):
        # (Cout, Cin, 3) tap k -> (cin_pad, cout_p) bf16
        w = jnp.transpose(wf[:, :, k], (1, 0))                  # (Cin, Cout)
        w = jnp.pad(w, ((0, cin_pad - w.shape[0]), (0, cout_p - w.shape[1])))
        return w.astype(jnp.bfloat16)

    w1l = pack_tap(w1f, 0, cin_p)
    w1m = pack_tap(w1f, 1, cin_p)
    w1r = pack_tap(w1f, 2, cin_p)
    w2l = pack_tap(w2f, 0, cout_p)
    w2m = pack_tap(w2f, 1, cout_p)
    w2r = pack_tap(w2f, 2, cout_p)

    sh_final = sh2
    if has_down:
        wdf, shd = _fold_conv_bn(params["wd"], params["bd"], params["gd"],
                                 params["bed"], params["md"], params["vd"], eps)
        wd_p = jnp.pad(jnp.transpose(wdf[:, :, 0], (1, 0)),
                       ((0, cin_p - Cin), (0, cout_p - Cout))).astype(jnp.bfloat16)
        # Fuse 1x1 downsample as extra output lanes of the middle-tap matmul.
        w1m = jnp.concatenate([w1m, wd_p], axis=1)              # (cin_p, 2*cout_p)
        sh_final = sh2 + shd                                    # single final shift

    wcols = w1m.shape[1]

    shifts = jnp.zeros((8, cout_p), jnp.float32)
    shifts = shifts.at[0, :Cout].set(sh1)
    shifts = shifts.at[1, :Cout].set(sh_final)

    # ---- layout: NCL -> flat lane-padded (B*L, Cin_p) rows -------------------
    # TODO(synk): move this transpose/pad (and the output slice/transpose) into
    #             the kernel to avoid the extra wrapper-side HBM round trips.
    x_rows = jnp.transpose(x_ncl, (0, 2, 1)).reshape(B * L, Cin)
    x_rows = jnp.pad(x_rows, ((0, 0), (0, cin_p - Cin)))

    # ---- block sizing (weights/shifts counted as double-buffered) -----------
    budget, vmem_limit = _vmem_budget_and_limit()
    if vmem_budget_bytes is not None:
        budget = vmem_budget_bytes
    weight_bytes = 2 * ((w1l.size + w1m.size + w1r.size
                         + w2l.size + w2m.size + w2r.size) * 2
                        + shifts.size * 4)
    nb = _choose_batch_per_block(B, L, cin_p, cout_p, wcols, budget,
                                 weight_bytes)
    block_rows = nb * L
    grid = (B // nb,)

    kernel = functools.partial(_residual_block_kernel, seq_len=L,
                               has_downsample=has_down, cout_p=cout_p)

    def invariant(arr):
        return pl.BlockSpec(arr.shape, lambda i: (0, 0))

    in_specs = [pl.BlockSpec((block_rows, cin_p), lambda i: (i, 0)),
                invariant(w1l), invariant(w1m), invariant(w1r),
                invariant(w2l), invariant(w2m), invariant(w2r),
                invariant(shifts)]
    operands = [x_rows, w1l, w1m, w1r, w2l, w2m, w2r, shifts]

    out_rows = pl.pallas_call(
        kernel,
        out_shape=jax.ShapeDtypeStruct((B * L, cout_p), jnp.float32),
        grid_spec=pltpu.PrefetchScalarGridSpec(
            num_scalar_prefetch=0,
            grid=grid,
            in_specs=in_specs,
            out_specs=pl.BlockSpec((block_rows, cout_p), lambda i: (i, 0)),
        ),
        compiler_params=pltpu.CompilerParams(
            dimension_semantics=("parallel",),
            vmem_limit_bytes=vmem_limit),
    )(*operands)

    out = out_rows[:, :Cout].reshape(B, L, Cout)
    return jnp.transpose(out, (0, 2, 1))            # back to PyTorch NCL


# ----------------------------------------------------------------------------
# Deterministic params (PyTorch layout) + pure-JAX reference
# ----------------------------------------------------------------------------
def make_params(key, in_channels, out_channels, eps=1e-5):
    keys = jax.random.split(key, 12)
    p = dict(eps=eps)
    p["w1"] = jax.random.normal(keys[0], (out_channels, in_channels, 3), jnp.float32) * 0.2
    p["b1"] = jax.random.normal(keys[1], (out_channels,), jnp.float32) * 0.1
    p["w2"] = jax.random.normal(keys[2], (out_channels, out_channels, 3), jnp.float32) * 0.2
    p["b2"] = jax.random.normal(keys[3], (out_channels,), jnp.float32) * 0.1
    p["g1"] = 1.0 + 0.1 * jax.random.normal(keys[4], (out_channels,), jnp.float32)
    p["be1"] = 0.1 * jax.random.normal(keys[5], (out_channels,), jnp.float32)
    p["m1"] = 0.1 * jax.random.normal(keys[6], (out_channels,), jnp.float32)
    p["v1"] = 1.0 + jax.nn.softplus(jax.random.normal(keys[7], (out_channels,), jnp.float32))
    p["g2"] = 1.0 + 0.1 * jax.random.normal(keys[8], (out_channels,), jnp.float32)
    p["be2"] = 0.1 * jax.random.normal(keys[9], (out_channels,), jnp.float32)
    p["m2"] = 0.05 * jnp.ones((out_channels,), jnp.float32)
    p["v2"] = 1.2 * jnp.ones((out_channels,), jnp.float32)
    if in_channels != out_channels:
        p["wd"] = jax.random.normal(keys[10], (out_channels, in_channels, 1), jnp.float32) * 0.3
        p["bd"] = jax.random.normal(keys[11], (out_channels,), jnp.float32) * 0.1
        p["gd"] = jnp.ones((out_channels,), jnp.float32)
        p["bed"] = jnp.zeros((out_channels,), jnp.float32)
        p["md"] = 0.02 * jnp.ones((out_channels,), jnp.float32)
        p["vd"] = 0.9 * jnp.ones((out_channels,), jnp.float32)
    return p


def reference_forward(x_ncl, params):
    """Pure-JAX reference matching PyTorch Conv1d/BN1d(eval)/ReLU, NCL layout."""
    eps = params["eps"]

    def conv1d(x, w, b, pad):
        y = jax.lax.conv_general_dilated(
            x, w, window_strides=(1,), padding=[(pad, pad)],
            dimension_numbers=("NCH", "OIH", "NCH"))
        return y + b[None, :, None]

    def bn(x, g, be, m, v):
        s = g / jnp.sqrt(v + eps)
        return x * s[None, :, None] + (be - m * s)[None, :, None]

    out = conv1d(x_ncl, params["w1"], params["b1"], 1)
    out = jnp.maximum(bn(out, params["g1"], params["be1"], params["m1"], params["v1"]), 0.0)
    out = conv1d(out, params["w2"], params["b2"], 1)
    out = bn(out, params["g2"], params["be2"], params["m2"], params["v2"])
    if "wd" in params:
        res = conv1d(x_ncl, params["wd"], params["bd"], 0)
        res = bn(res, params["gd"], params["bed"], params["md"], params["vd"])
    else:
        res = x_ncl
    return jnp.maximum(out + res, 0.0)


if __name__ == "__main__":
    key = jax.random.PRNGKey(0)
    k_x, k_p, k_x2, k_p2 = jax.random.split(key, 4)

    # bf16 MXU operands -> compare against the f32 reference at ~2e-2.
    RTOL = ATOL = 2e-2

    # Case 1: in_channels != out_channels (fused 1x1-conv + BN downsample path).
    B, Cin, Cout, L = 2, 4, 8, 16
    x_ncl = jax.random.normal(k_x, (B, Cin, L), jnp.float32)
    params = make_params(k_p, Cin, Cout)
    out = jax.block_until_ready(residual_block_forward(x_ncl, params))
    ref = reference_forward(x_ncl, params)
    assert out.shape == (B, Cout, L)
    assert jnp.allclose(out, ref, rtol=RTOL, atol=ATOL), (
        float(jnp.max(jnp.abs(out - ref))))

    # Case 2: in_channels == out_channels (identity residual, downsample
    # skipped statically in the kernel).
    x2_ncl = jax.random.normal(k_x2, (B, Cout, L), jnp.float32)
    params2 = make_params(k_p2, Cout, Cout)
    out2 = jax.block_until_ready(residual_block_forward(x2_ncl, params2))
    ref2 = reference_forward(x2_ncl, params2)
    assert jnp.allclose(out2, ref2, rtol=RTOL, atol=ATOL), (
        float(jnp.max(jnp.abs(out2 - ref2))))

    print("KERNEL_OK")
</pallas_src>

<mosaic_0001>
module attributes {stable_mosaic.version = 11 : i64} {
  func.func @_residual_block_kernel(%arg0: i32, %arg1: memref<16x128xf32, #tpu.memory_space<vmem>>, %arg2: memref<128x128xbf16, #tpu.memory_space<vmem>>, %arg3: memref<128x256xbf16, #tpu.memory_space<vmem>>, %arg4: memref<128x128xbf16, #tpu.memory_space<vmem>>, %arg5: memref<128x128xbf16, #tpu.memory_space<vmem>>, %arg6: memref<128x128xbf16, #tpu.memory_space<vmem>>, %arg7: memref<128x128xbf16, #tpu.memory_space<vmem>>, %arg8: memref<8x128xf32, #tpu.memory_space<vmem>>, %arg9: memref<16x128xf32, #tpu.memory_space<vmem>>) attributes {dimension_semantics = [#tpu.dimension_semantics<parallel>], iteration_bounds = array<i64: 2>, scalar_prefetch = 0 : i64, scratch_operands = 0 : i64, tpu.core_type = #tpu.core_type<tc>, window_params = [{transform_indices = @transform_0, window_bounds = array<i64: 16, 128>}, {pipeline_mode = #tpu.pipeline_mode<synchronous>, transform_indices = @transform_1, window_bounds = array<i64: 128, 128>}, {pipeline_mode = #tpu.pipeline_mode<synchronous>, transform_indices = @transform_2, window_bounds = array<i64: 128, 256>}, {pipeline_mode = #tpu.pipeline_mode<synchronous>, transform_indices = @transform_3, window_bounds = array<i64: 128, 128>}, {pipeline_mode = #tpu.pipeline_mode<synchronous>, transform_indices = @transform_4, window_bounds = array<i64: 128, 128>}, {pipeline_mode = #tpu.pipeline_mode<synchronous>, transform_indices = @transform_5, window_bounds = array<i64: 128, 128>}, {pipeline_mode = #tpu.pipeline_mode<synchronous>, transform_indices = @transform_6, window_bounds = array<i64: 128, 128>}, {pipeline_mode = #tpu.pipeline_mode<synchronous>, transform_indices = @transform_7, window_bounds = array<i64: 8, 128>}, {transform_indices = @transform_8, window_bounds = array<i64: 16, 128>}]} {
    %c0 = arith.constant 0 : index
    %c0_0 = arith.constant 0 : index
    %0 = vector.load %arg1[%c0, %c0_0] : memref<16x128xf32, #tpu.memory_space<vmem>>, vector<16x128xf32>
    %1 = tpu.iota {dimensions = array<i32: 0>} : vector<16x1xi32>
    %c16_i32 = arith.constant 16 : i32
    %c0_i32 = arith.constant 0 : i32
    %2 = arith.cmpi eq, %c16_i32, %c0_i32 : i32
    %c1_i32 = arith.constant 1 : i32
    %3 = arith.select %2, %c1_i32, %c16_i32 : i32
    %4 = vector.broadcast %3 : i32 to vector<16x1xi32>
    %5 = arith.remsi %1, %4 : vector<16x1xi32>
    %c0_i32_1 = arith.constant 0 : i32
    %6 = vector.broadcast %c0_i32_1 : i32 to vector<16x1xi32>
    %7 = arith.cmpi ne, %5, %6 : vector<16x1xi32>
    %c0_i32_2 = arith.constant 0 : i32
    %8 = vector.broadcast %c0_i32_2 : i32 to vector<16x1xi32>
    %9 = arith.cmpi slt, %5, %8 : vector<16x1xi32>
    %c0_i32_3 = arith.constant 0 : i32
    %10 = arith.cmpi slt, %3, %c0_i32_3 : i32
    %11 = vector.broadcast %10 : i1 to vector<16x1xi1>
    %12 = vector.broadcast %11 : vector<16x1xi1> to vector<16x1xi1>
    %13 = arith.xori %9, %12 : vector<16x1xi1>
    %14 = arith.andi %13, %7 : vector<16x1xi1>
    %15 = vector.broadcast %3 : i32 to vector<16x1xi32>
    %16 = arith.addi %5, %15 : vector<16x1xi32>
    %17 = arith.select %14, %16, %5 : vector<16x1xi1>, vector<16x1xi32>
    %c0_i32_4 = arith.constant 0 : i32
    %18 = vector.broadcast %c0_i32_4 : i32 to vector<16x1xi32>
    %19 = arith.cmpi eq, %17, %18 : vector<16x1xi32>
    %c15_i32 = arith.constant 15 : i32
    %20 = vector.broadcast %c15_i32 : i32 to vector<16x1xi32>
    %21 = arith.cmpi eq, %17, %20 : vector<16x1xi32>
    %cst = arith.constant 0.000000e+00 : f32
    %22 = vector.broadcast %cst : f32 to vector<16x128xf32>
    %c1_i32_5 = arith.constant 1 : i32
    %23 = tpu.dynamic_rotate %0 by %c1_i32_5 dim 0 : vector<16x128xf32>, i32 -> vector<16x128xf32>
    %24 = vector.shape_cast %19 : vector<16x1xi1> to vector<16x1xi1>
    %25 = vector.broadcast %24 : vector<16x1xi1> to vector<16x128xi1>
    %26 = arith.select %25, %22, %23 : vector<16x128xi1>, vector<16x128xf32>
    %27 = arith.truncf %26 : vector<16x128xf32> to vector<16x128xbf16>
    %c15_i32_6 = arith.constant 15 : i32
    %28 = tpu.dynamic_rotate %0 by %c15_i32_6 dim 0 : vector<16x128xf32>, i32 -> vector<16x128xf32>
    %29 = vector.shape_cast %21 : vector<16x1xi1> to vector<16x1xi1>
    %30 = vector.broadcast %29 : vector<16x1xi1> to vector<16x128xi1>
    %31 = arith.select %30, %22, %28 : vector<16x128xi1>, vector<16x128xf32>
    %32 = arith.truncf %31 : vector<16x128xf32> to vector<16x128xbf16>
    %33 = arith.truncf %0 : vector<16x128xf32> to vector<16x128xbf16>
    %c0_7 = arith.constant 0 : index
    %c0_8 = arith.constant 0 : index
    %34 = vector.load %arg3[%c0_7, %c0_8] : memref<128x256xbf16, #tpu.memory_space<vmem>>, vector<128x256xbf16>
    %cst_9 = arith.constant dense<0.000000e+00> : vector<16x256xf32>
    %35 = tpu.matmul %33, %34, %cst_9 {dimension_numbers = #tpu.dot_dimension_numbers<[1], [0], [0], [1], [0, 0, 1, 1], [], []>} : vector<16x128xbf16>, vector<128x256xbf16>, vector<16x256xf32> -> vector<16x256xf32>
    %c0_10 = arith.constant 0 : index
    %c0_11 = arith.constant 0 : index
    %36 = vector.load %arg2[%c0_10, %c0_11] : memref<128x128xbf16, #tpu.memory_space<vmem>>, vector<128x128xbf16>
    %cst_12 = arith.constant dense<0.000000e+00> : vector<16x128xf32>
    %37 = tpu.matmul %27, %36, %cst_12 {dimension_numbers = #tpu.dot_dimension_numbers<[1], [0], [0], [1], [0, 0, 1, 1], [], []>} : vector<16x128xbf16>, vector<128x128xbf16>, vector<16x128xf32> -> vector<16x128xf32>
    %c0_13 = arith.constant 0 : index
    %c0_14 = arith.constant 0 : index
    %38 = vector.load %arg4[%c0_13, %c0_14] : memref<128x128xbf16, #tpu.memory_space<vmem>>, vector<128x128xbf16>
    %cst_15 = arith.constant dense<0.000000e+00> : vector<16x128xf32>
    %39 = tpu.matmul %32, %38, %cst_15 {dimension_numbers = #tpu.dot_dimension_numbers<[1], [0], [0], [1], [0, 0, 1, 1], [], []>} : vector<16x128xbf16>, vector<128x128xbf16>, vector<16x128xf32> -> vector<16x128xf32>
    %40 = arith.addf %37, %39 : vector<16x128xf32>
    %41 = vector.extract_strided_slice %35 {offsets = [0, 0], sizes = [16, 128], strides = [1, 1]} : vector<16x256xf32> to vector<16x128xf32>
    %42 = arith.addf %41, %40 : vector<16x128xf32>
    %43 = vector.extract_strided_slice %35 {offsets = [0, 128], sizes = [16, 128], strides = [1, 1]} : vector<16x256xf32> to vector<16x128xf32>
    %c0_16 = arith.constant 0 : index
    %c0_17 = arith.constant 0 : index
    %44 = vector.load %arg8[%c0_16, %c0_17] : memref<8x128xf32, #tpu.memory_space<vmem>>, vector<1x128xf32>
    %45 = vector.broadcast %44 : vector<1x128xf32> to vector<16x128xf32>
    %46 = arith.addf %42, %45 : vector<16x128xf32>
    %cst_18 = arith.constant 0.000000e+00 : f32
    %47 = vector.broadcast %cst_18 : f32 to vector<16x128xf32>
    %48 = arith.maximumf %46, %47 : vector<16x128xf32>
    %cst_19 = arith.constant 0.000000e+00 : f32
    %49 = vector.broadcast %cst_19 : f32 to vector<16x128xf32>
    %c1_i32_20 = arith.constant 1 : i32
    %50 = tpu.dynamic_rotate %48 by %c1_i32_20 dim 0 : vector<16x128xf32>, i32 -> vector<16x128xf32>
    %51 = vector.shape_cast %19 : vector<16x1xi1> to vector<16x1xi1>
    %52 = vector.broadcast %51 : vector<16x1xi1> to vector<16x128xi1>
    %53 = arith.select %52, %49, %50 : vector<16x128xi1>, vector<16x128xf32>
    %54 = arith.truncf %53 : vector<16x128xf32> to vector<16x128xbf16>
    %c15_i32_21 = arith.constant 15 : i32
    %55 = tpu.dynamic_rotate %48 by %c15_i32_21 dim 0 : vector<16x128xf32>, i32 -> vector<16x128xf32>
    %56 = vector.shape_cast %21 : vector<16x1xi1> to vector<16x1xi1>
    %57 = vector.broadcast %56 : vector<16x1xi1> to vector<16x128xi1>
    %58 = arith.select %57, %49, %55 : vector<16x128xi1>, vector<16x128xf32>
    %59 = arith.truncf %58 : vector<16x128xf32> to vector<16x128xbf16>
    %60 = arith.truncf %48 : vector<16x128xf32> to vector<16x128xbf16>
    %c0_22 = arith.constant 0 : index
    %c0_23 = arith.constant 0 : index
    %61 = vector.load %arg6[%c0_22, %c0_23] : memref<128x128xbf16, #tpu.memory_space<vmem>>, vector<128x128xbf16>
    %cst_24 = arith.constant dense<0.000000e+00> : vector<16x128xf32>
    %62 = tpu.matmul %60, %61, %cst_24 {dimension_numbers = #tpu.dot_dimension_numbers<[1], [0], [0], [1], [0, 0, 1, 1], [], []>} : vector<16x128xbf16>, vector<128x128xbf16>, vector<16x128xf32> -> vector<16x128xf32>
    %c0_25 = arith.constant 0 : index
    %c0_26 = arith.constant 0 : index
    %63 = vector.load %arg5[%c0_25, %c0_26] : memref<128x128xbf16, #tpu.memory_space<vmem>>, vector<128x128xbf16>
    %cst_27 = arith.constant dense<0.000000e+00> : vector<16x128xf32>
    %64 = tpu.matmul %54, %63, %cst_27 {dimension_numbers = #tpu.dot_dimension_numbers<[1], [0], [0], [1], [0, 0, 1, 1], [], []>} : vector<16x128xbf16>, vector<128x128xbf16>, vector<16x128xf32> -> vector<16x128xf32>
    %c0_28 = arith.constant 0 : index
    %c0_29 = arith.constant 0 : index
    %65 = vector.load %arg7[%c0_28, %c0_29] : memref<128x128xbf16, #tpu.memory_space<vmem>>, vector<128x128xbf16>
    %cst_30 = arith.constant dense<0.000000e+00> : vector<16x128xf32>
    %66 = tpu.matmul %59, %65, %cst_30 {dimension_numbers = #tpu.dot_dimension_numbers<[1], [0], [0], [1], [0, 0, 1, 1], [], []>} : vector<16x128xbf16>, vector<128x128xbf16>, vector<16x128xf32> -> vector<16x128xf32>
    %67 = arith.addf %64, %66 : vector<16x128xf32>
    %68 = arith.addf %62, %67 : vector<16x128xf32>
    %69 = arith.addf %68, %43 : vector<16x128xf32>
    %c1 = arith.constant 1 : index
    %c0_31 = arith.constant 0 : index
    %70 = vector.load %arg8[%c1, %c0_31] : memref<8x128xf32, #tpu.memory_space<vmem>>, vector<1x128xf32>
    %71 = vector.broadcast %70 : vector<1x128xf32> to vector<16x128xf32>
    %72 = arith.addf %69, %71 : vector<16x128xf32>
    %cst_32 = arith.constant 0.000000e+00 : f32
    %73 = vector.broadcast %cst_32 : f32 to vector<16x128xf32>
    %74 = arith.maximumf %72, %73 : vector<16x128xf32>
    %c0_33 = arith.constant 0 : index
    %c0_34 = arith.constant 0 : index
    %75 = vector.load %arg9[%c0_33, %c0_34] : memref<16x128xf32, #tpu.memory_space<vmem>>, vector<16x128xf32>
    tpu.vector_store %arg9[%c0_33, %c0_34], %74 {strides = array<i32>} : memref<16x128xf32, #tpu.memory_space<vmem>>, vector<16x128xf32>,
    return
  }
  func.func @transform_0(%arg0: i32) -> (i32, i32) {
    %c0_i32 = arith.constant 0 : i32
    %c0_i32_0 = arith.constant 0 : i32
    return %arg0, %c0_i32 : i32, i32
  }
  func.func @transform_1(%arg0: i32) -> (i32, i32) {
    %c0_i32 = arith.constant 0 : i32
    %c0_i32_0 = arith.constant 0 : i32
    %c0_i32_1 = arith.constant 0 : i32
    return %c0_i32, %c0_i32_0 : i32, i32
  }
  func.func @transform_2(%arg0: i32) -> (i32, i32) {
    %c0_i32 = arith.constant 0 : i32
    %c0_i32_0 = arith.constant 0 : i32
    %c0_i32_1 = arith.constant 0 : i32
    return %c0_i32, %c0_i32_0 : i32, i32
  }
  func.func @transform_3(%arg0: i32) -> (i32, i32) {
    %c0_i32 = arith.constant 0 : i32
    %c0_i32_0 = arith.constant 0 : i32
    %c0_i32_1 = arith.constant 0 : i32
    return %c0_i32, %c0_i32_0 : i32, i32
  }
  func.func @transform_4(%arg0: i32) -> (i32, i32) {
    %c0_i32 = arith.constant 0 : i32
    %c0_i32_0 = arith.constant 0 : i32
    %c0_i32_1 = arith.constant 0 : i32
    return %c0_i32, %c0_i32_0 : i32, i32
  }
  func.func @transform_5(%arg0: i32) -> (i32, i32) {
    %c0_i32 = arith.constant 0 : i32
    %c0_i32_0 = arith.constant 0 : i32
    %c0_i32_1 = arith.constant 0 : i32
    return %c0_i32, %c0_i32_0 : i32, i32
  }
  func.func @transform_6(%arg0: i32) -> (i32, i32) {
    %c0_i32 = arith.constant 0 : i32
    %c0_i32_0 = arith.constant 0 : i32
    %c0_i32_1 = arith.constant 0 : i32
    return %c0_i32, %c0_i32_0 : i32, i32
  }
  func.func @transform_7(%arg0: i32) -> (i32, i32) {
    %c0_i32 = arith.constant 0 : i32
    %c0_i32_0 = arith.constant 0 : i32
    %c0_i32_1 = arith.constant 0 : i32
    return %c0_i32, %c0_i32_0 : i32, i32
  }
  func.func @transform_8(%arg0: i32) -> (i32, i32) {
    %c0_i32 = arith.constant 0 : i32
    %c0_i32_0 = arith.constant 0 : i32
    return %arg0, %c0_i32 : i32, i32
  }
}

</mosaic_0001>

<llo_original>
// kernel: tpu_custom_call.1
$region0: #{tpu_custom_call.1}
  #allocation0 [shape = 'u32[]', space=smem, size = 0x4, offset = 0x4, fixed_abs, tag = 'smem constant byte address 0x4 - core index']
  #allocation1 [shape = 'u32[144,128]{1,0:T(1,128)}', space=vmem, size = 0x12000, scoped, tag = 'internal scratch']
  %s0 = inlined_call_operand.hbm [shape: f32[32,128], index: 0, kind: input, shape index: {}]
  %s1 = inlined_call_operand.hbm [shape: bf16[128,128], index: 1, kind: input, shape index: {}]
  %s2 = inlined_call_operand.hbm [shape: bf16[128,256], index: 2, kind: input, shape index: {}]
  %s3 = inlined_call_operand.hbm [shape: bf16[128,128], index: 3, kind: input, shape index: {}]
  %s4 = inlined_call_operand.hbm [shape: bf16[128,128], index: 4, kind: input, shape index: {}]
  %s5 = inlined_call_operand.hbm [shape: bf16[128,128], index: 5, kind: input, shape index: {}]
  %s6 = inlined_call_operand.hbm [shape: bf16[128,128], index: 6, kind: input, shape index: {}]
  %s7 = inlined_call_operand.vmem [shape: f32[8,128], index: 7, kind: input, shape index: {}]
  %s8 = inlined_call_operand.hbm [shape: f32[32,128], index: 8, kind: output, shape index: {}]
  %s9 = sld [smem:[#allocation0]]
  $region93: #{tpu_custom_call.1} parent=0
    _
  %s11 = ssub.s32 1, %s9
  %s12 = scalar_select 0, %s11, %s9
  $region1: #{tpu_custom_call.1} parent=0
    #allocation2 [shape = 'u8[16384]{0}', space=vmem, size = 0x4000, scoped, tag = 'input window, operand 0']
    #allocation3 [shape = 's32[2]{0}', space=sflag, size = 0x8, scoped, tag = 'scoped memory for tpu_custom_call.1']
    #allocation4 [shape = 's32[2]{0}', space=sflag, size = 0x8, scoped, tag = 'scoped memory for tpu_custom_call.1']
    #allocation5 [shape = 'u8[32768]{0}', space=vmem, size = 0x8000, scoped, tag = 'input window, operand 1, single buffered']
    #allocation6 [shape = 's32[1]{0}', space=sflag, size = 0x4, scoped, tag = 'scoped memory for tpu_custom_call.1']
    #allocation7 [shape = 'u8[65536]{0}', space=vmem, size = 0x10000, scoped, tag = 'input window, operand 2, single buffered']
    #allocation8 [shape = 'u8[32768]{0}', space=vmem, size = 0x8000, scoped, tag = 'input window, operand 3, single buffered']
    #allocation9 [shape = 's32[1]{0}', space=sflag, size = 0x4, scoped, tag = 'scoped memory for tpu_custom_call.1']
    #allocation10 [shape = 'u8[32768]{0}', space=vmem, size = 0x8000, scoped, tag = 'input window, operand 4, single buffered']
    #allocation11 [shape = 'u8[32768]{0}', space=vmem, size = 0x8000, scoped, tag = 'input window, operand 5, single buffered']
    #allocation12 [shape = 's32[1]{0}', space=sflag, size = 0x4, scoped, tag = 'scoped memory for tpu_custom_call.1']
    #allocation13 [shape = 'u8[32768]{0}', space=vmem, size = 0x8000, scoped, tag = 'input window, operand 6, single buffered']
    #allocation14 [shape = 'u8[16384]{0}', space=vmem, size = 0x4000, scoped, tag = 'output window, operand 0']
    %13 = vsyncpa [#allocation3], 0
    %s14 = scalar_lea.sflag [#allocation3], 1
    %15 = vsyncpa %s14, 0
    %16 = vsyncpa [#allocation6], 0
    %17 = vsyncpa [#allocation9], 0
    %18 = vsyncpa [#allocation12], 0
    %19 = vsyncpa [#allocation4], 0
    %s20 = scalar_lea.sflag [#allocation4], 1
    %21 = vsyncpa %s20, 0
    loop: start=0, step=1, limit=4
    $region2: #{tpu_custom_call.1} parent=1 // loop_pre_header
      _
    $region3: #{tpu_custom_call.1} parent=1 // loop_header
      %s23 = sphi 0, %s27
      %p24 = scmp.ge.s32.totalorder %s23, 4
      %s33 = sphi 0, %s35
      %s36 = sphi 0, %s33
      %s37 = sphi 0, %s36
      %s53 = sphi 0, %s37
      %s57 = sphi 0, %s57
      %s59 = sphi 0, %s57
      %s60 = sphi 0, %s59
      %s74 = sphi 0, %s60
      %s78 = sphi 0, %s78
      %s80 = sphi 0, %s78
      %s81 = sphi 0, %s80
      %s95 = sphi 0, %s81
      %s99 = sphi 0, %s99
      %s101 = sphi 0, %s99
      %s102 = sphi 0, %s101
      %s116 = sphi 0, %s102
      %s120 = sphi 0, %s120
      %s122 = sphi 0, %s120
      %s123 = sphi 0, %s122
      %s137 = sphi 0, %s123
      %s141 = sphi 0, %s141
      %s143 = sphi 0, %s141
      %s144 = sphi 0, %s143
      %s158 = sphi 0, %s144
      %s162 = sphi 0, %s162
      %s164 = sphi 0, %s162
      %s165 = sphi 0, %s164
      %s179 = sphi 0, %s165
      %s183 = sphi 0, %s183
      %s185 = sphi 0, %s183
      %s186 = sphi 0, %s185
      %s200 = sphi 0, %s186
      %s206 = sphi 0, %s208
      %s209 = sphi 0, %s206
      %s210 = sphi 0, %s209
      %s226 = sphi 0, %s210
    $region4: #{tpu_custom_call.1} parent=1 // loop_header_branch
      %26 = sbr.rel (%p24) target = $region8
    $region5: #{tpu_custom_call.1} parent=1 // loop_body
      %s28 = ssub.s32 %s23, 1
      %s29 = ssub.s32 %s23, 2
      %s30 = sadd.s32 %s23, 1
      %s31 = ssub.s32 %s23, %s30
      %p32 = scmp.eq.s32.totalorder %s31, 0
      %s34 = sadd.s32 %s33, 1
      %s35 = scalar_select %p32, %s33, %s34
      %p38 = pneg %p32
      %p39 = scmp.eq.s32.totalorder %s23, 1
      %p40 = por %p38, %p39
      %p41 = scmp.ne.s32.totalorder %s33, %s36
      %p42 = scmp.eq.s32.totalorder %s23, 0
      %p43 = por %p41, %p42
      %p44 = scmp.ne.s32.totalorder %s33, %s36
      %p45 = scmp.eq.s32.totalorder %s28, 1
      %p46 = por %p44, %p45
      %p47 = scmp.ne.s32.totalorder %s36, %s37
      %p48 = scmp.eq.s32.totalorder %s28, 0
      %p49 = por %p47, %p48
      %p50 = scmp.ne.s32.totalorder %s36, %s37
      %p51 = scmp.eq.s32.totalorder %s29, 1
      %p52 = por %p50, %p51
      %p54 = scmp.ne.s32.totalorder %s37, %s53
      %p55 = scmp.eq.s32.totalorder %s29, 0
      %p56 = por %p54, %p55
      %s58 = sadd.s32 %s57, 1
      %p61 = scmp.eq.s32.totalorder %s23, 1
      %p62 = scmp.ne.s32.totalorder %s57, %s59
      %p63 = scmp.eq.s32.totalorder %s23, 0
      %p64 = por %p62, %p63
      %p65 = scmp.ne.s32.totalorder %s57, %s59
      %p66 = scmp.eq.s32.totalorder %s28, 1
      %p67 = por %p65, %p66
      %p68 = scmp.ne.s32.totalorder %s59, %s60
      %p69 = scmp.eq.s32.totalorder %s28, 0
      %p70 = por %p68, %p69
      %p71 = scmp.ne.s32.totalorder %s59, %s60
      %p72 = scmp.eq.s32.totalorder %s29, 1
      %p73 = por %p71, %p72
      %p75 = scmp.ne.s32.totalorder %s60, %s74
      %p76 = scmp.eq.s32.totalorder %s29, 0
      %p77 = por %p75, %p76
      %s79 = sadd.s32 %s78, 1
      %p82 = scmp.eq.s32.totalorder %s23, 1
      %p83 = scmp.ne.s32.totalorder %s78, %s80
      %p84 = scmp.eq.s32.totalorder %s23, 0
      %p85 = por %p83, %p84
      %p86 = scmp.ne.s32.totalorder %s78, %s80
      %p87 = scmp.eq.s32.totalorder %s28, 1
      %p88 = por %p86, %p87
      %p89 = scmp.ne.s32.totalorder %s80, %s81
      %p90 = scmp.eq.s32.totalorder %s28, 0
      %p91 = por %p89, %p90
      %p92 = scmp.ne.s32.totalorder %s80, %s81
      %p93 = scmp.eq.s32.totalorder %s29, 1
      %p94 = por %p92, %p93
      %p96 = scmp.ne.s32.totalorder %s81, %s95
      %p97 = scmp.eq.s32.totalorder %s29, 0
      %p98 = por %p96, %p97
      %s100 = sadd.s32 %s99, 1
      %p103 = scmp.eq.s32.totalorder %s23, 1
      %p104 = scmp.ne.s32.totalorder %s99, %s101
      %p105 = scmp.eq.s32.totalorder %s23, 0
      %p106 = por %p104, %p105
      %p107 = scmp.ne.s32.totalorder %s99, %s101
      %p108 = scmp.eq.s32.totalorder %s28, 1
      %p109 = por %p107, %p108
      %p110 = scmp.ne.s32.totalorder %s101, %s102
      %p111 = scmp.eq.s32.totalorder %s28, 0
      %p112 = por %p110, %p111
      %p113 = scmp.ne.s32.totalorder %s101, %s102
      %p114 = scmp.eq.s32.totalorder %s29, 1
      %p115 = por %p113, %p114
      %p117 = scmp.ne.s32.totalorder %s102, %s116
      %p118 = scmp.eq.s32.totalorder %s29, 0
      %p119 = por %p117, %p118
      %s121 = sadd.s32 %s120, 1
      %p124 = scmp.eq.s32.totalorder %s23, 1
      %p125 = scmp.ne.s32.totalorder %s120, %s122
      %p126 = scmp.eq.s32.totalorder %s23, 0
      %p127 = por %p125, %p126
      %p128 = scmp.ne.s32.totalorder %s120, %s122
      %p129 = scmp.eq.s32.totalorder %s28, 1
      %p130 = por %p128, %p129
      %p131 = scmp.ne.s32.totalorder %s122, %s123
      %p132 = scmp.eq.s32.totalorder %s28, 0
      %p133 = por %p131, %p132
      %p134 = scmp.ne.s32.totalorder %s122, %s123
      %p135 = scmp.eq.s32.totalorder %s29, 1
      %p136 = por %p134, %p135
      %p138 = scmp.ne.s32.totalorder %s123, %s137
      %p139 = scmp.eq.s32.totalorder %s29, 0
      %p140 = por %p138, %p139
      %s142 = sadd.s32 %s141, 1
      %p145 = scmp.eq.s32.totalorder %s23, 1
      %p146 = scmp.ne.s32.totalorder %s141, %s143
      %p147 = scmp.eq.s32.totalorder %s23, 0
      %p148 = por %p146, %p147
      %p149 = scmp.ne.s32.totalorder %s141, %s143
      %p150 = scmp.eq.s32.totalorder %s28, 1
      %p151 = por %p149, %p150
      %p152 = scmp.ne.s32.totalorder %s143, %s144
      %p153 = scmp.eq.s32.totalorder %s28, 0
      %p154 = por %p152, %p153
      %p155 = scmp.ne.s32.totalorder %s143, %s144
      %p156 = scmp.eq.s32.totalorder %s29, 1
      %p157 = por %p155, %p156
      %p159 = scmp.ne.s32.totalorder %s144, %s158
      %p160 = scmp.eq.s32.totalorder %s29, 0
      %p161 = por %p159, %p160
      %s163 = sadd.s32 %s162, 1
      %p166 = scmp.eq.s32.totalorder %s23, 1
      %p167 = scmp.ne.s32.totalorder %s162, %s164
      %p168 = scmp.eq.s32.totalorder %s23, 0
      %p169 = por %p167, %p168
      %p170 = scmp.ne.s32.totalorder %s162, %s164
      %p171 = scmp.eq.s32.totalorder %s28, 1
      %p172 = por %p170, %p171
      %p173 = scmp.ne.s32.totalorder %s164, %s165
      %p174 = scmp.eq.s32.totalorder %s28, 0
      %p175 = por %p173, %p174
      %p176 = scmp.ne.s32.totalorder %s164, %s165
      %p177 = scmp.eq.s32.totalorder %s29, 1
      %p178 = por %p176, %p177
      %p180 = scmp.ne.s32.totalorder %s165, %s179
      %p181 = scmp.eq.s32.totalorder %s29, 0
      %p182 = por %p180, %p181
      %s184 = sadd.s32 %s183, 1
      %p187 = scmp.eq.s32.totalorder %s23, 1
      %p188 = scmp.ne.s32.totalorder %s183, %s185
      %p189 = scmp.eq.s32.totalorder %s23, 0
      %p190 = por %p188, %p189
      %p191 = scmp.ne.s32.totalorder %s183, %s185
      %p192 = scmp.eq.s32.totalorder %s28, 1
      %p193 = por %p191, %p192
      %p194 = scmp.ne.s32.totalorder %s185, %s186
      %p195 = scmp.eq.s32.totalorder %s28, 0
      %p196 = por %p194, %p195
      %p197 = scmp.ne.s32.totalorder %s185, %s186
      %p198 = scmp.eq.s32.totalorder %s29, 1
      %p199 = por %p197, %p198
      %p201 = scmp.ne.s32.totalorder %s186, %s200
      %p202 = scmp.eq.s32.totalorder %s29, 0
      %p203 = por %p201, %p202
      %s204 = ssub.s32 %s23, %s30
      %p205 = scmp.eq.s32.totalorder %s204, 0
      %s207 = sadd.s32 %s206, 1
      %s208 = scalar_select %p205, %s206, %s207
      %p211 = pneg %p205
      %p212 = scmp.eq.s32.totalorder %s23, 1
      %p213 = por %p211, %p212
      %p214 = scmp.ne.s32.totalorder %s206, %s209
      %p215 = scmp.eq.s32.totalorder %s23, 0
      %p216 = por %p214, %p215
      %p217 = scmp.ne.s32.totalorder %s206, %s209
      %p218 = scmp.eq.s32.totalorder %s28, 1
      %p219 = por %p217, %p218
      %p220 = scmp.ne.s32.totalorder %s209, %s210
      %p221 = scmp.eq.s32.totalorder %s28, 0
      %p222 = por %p220, %p221
      %p223 = scmp.ne.s32.totalorder %s209, %s210
      %p224 = scmp.eq.s32.totalorder %s29, 1
      %p225 = por %p223, %p224
      %p227 = scmp.ne.s32.totalorder %s210, %s226
      %p228 = scmp.eq.s32.totalorder %s29, 0
      %p229 = por %p227, %p228
      %p230 = scmp.le.s32.totalorder 1, %s23
      %p231 = scmp.lt.s32.totalorder %s23, 3
      %p232 = pnand %p230, %p231
      %p233 = pneg %p232
      // Predicated region
      $region9: #{tpu_custom_call.1} parent=5 // pred_check
        _
      $region10: #{tpu_custom_call.1} parent=5 // pred_check_branch
        %235 = sbr.rel (%p232) target = $region12
      $region11: #{tpu_custom_call.1} parent=5 // pred_region
        %s236 = ssub.s32 %s23, 1
        // Predicated region
        $region13: #{tpu_custom_call.1} parent=11 // pred_check
          %p237 = pneg %p70
        $region14: #{tpu_custom_call.1} parent=11 // pred_check_branch
          %239 = sbr.rel (%p237) target = $region16
        $region15: #{tpu_custom_call.1} parent=11 // pred_region
          %s241 = ssub.s32 1024, 1024
          %242 = vsyncadd [#allocation6], %s241
          %s243 = sshll.u32 [#allocation5], 4
          %s244 = int_to_ptr.vmem [resolvable:$true] %s243
          %249 = dma.hbm_to_vmem [thread:$0]  %s1, 1024, %s244, [#allocation6], 64, 64, 4
        $region16: #{tpu_custom_call.1} parent=11 // pred_fallthru
          _
        // Predicated region
        $region17: #{tpu_custom_call.1} parent=11 // pred_check
          %p250 = pneg %p91
        $region18: #{tpu_custom_call.1} parent=11 // pred_check_branch
          %252 = sbr.rel (%p250) target = $region20
        $region19: #{tpu_custom_call.1} parent=11 // pred_region
          %s254 = ssub.s32 2048, 2048
          %255 = vsyncadd [#allocation6], %s254
          %s256 = sshll.u32 [#allocation7], 4
          %s257 = int_to_ptr.vmem [resolvable:$true] %s256
          %262 = dma.hbm_to_vmem [thread:$0]  %s2, 2048, %s257, [#allocation6], 128, 128, 8
        $region20: #{tpu_custom_call.1} parent=11 // pred_fallthru
          _
        // Predicated region
        $region21: #{tpu_custom_call.1} parent=11 // pred_check
          %p263 = pneg %p112
        $region22: #{tpu_custom_call.1} parent=11 // pred_check_branch
          %265 = sbr.rel (%p263) target = $region24
        $region23: #{tpu_custom_call.1} parent=11 // pred_region
          %s267 = ssub.s32 1024, 1024
          %268 = vsyncadd [#allocation9], %s267
          %s269 = sshll.u32 [#allocation8], 4
          %s270 = int_to_ptr.vmem [resolvable:$true] %s269
          %275 = dma.hbm_to_vmem [thread:$0]  %s3, 1024, %s270, [#allocation9], 64, 64, 4
        $region24: #{tpu_custom_call.1} parent=11 // pred_fallthru
          _
        // Predicated region
        $region25: #{tpu_custom_call.1} parent=11 // pred_check
          %p276 = pneg %p133
        $region26: #{tpu_custom_call.1} parent=11 // pred_check_branch
          %278 = sbr.rel (%p276) target = $region28
        $region27: #{tpu_custom_call.1} parent=11 // pred_region
          %s280 = ssub.s32 1024, 1024
          %281 = vsyncadd [#allocation9], %s280
          %s282 = sshll.u32 [#allocation10], 4
          %s283 = int_to_ptr.vmem [resolvable:$true] %s282
          %288 = dma.hbm_to_vmem [thread:$0]  %s4, 1024, %s283, [#allocation9], 64, 64, 4
        $region28: #{tpu_custom_call.1} parent=11 // pred_fallthru
          _
        // Predicated region
        $region29: #{tpu_custom_call.1} parent=11 // pred_check
          %p289 = pneg %p154
        $region30: #{tpu_custom_call.1} parent=11 // pred_check_branch
          %291 = sbr.rel (%p289) target = $region32
        $region31: #{tpu_custom_call.1} parent=11 // pred_region
          %s293 = ssub.s32 1024, 1024
          %294 = vsyncadd [#allocation12], %s293
          %s295 = sshll.u32 [#allocation11], 4
          %s296 = int_to_ptr.vmem [resolvable:$true] %s295
          %301 = dma.hbm_to_vmem [thread:$0]  %s5, 1024, %s296, [#allocation12], 64, 64, 4
        $region32: #{tpu_custom_call.1} parent=11 // pred_fallthru
          _
        // Predicated region
        $region33: #{tpu_custom_call.1} parent=11 // pred_check
          %p302 = pneg %p175
        $region34: #{tpu_custom_call.1} parent=11 // pred_check_branch
          %304 = sbr.rel (%p302) target = $region36
        $region35: #{tpu_custom_call.1} parent=11 // pred_region
          %s306 = ssub.s32 1024, 1024
          %307 = vsyncadd [#allocation12], %s306
          %s308 = sshll.u32 [#allocation13], 4
          %s309 = int_to_ptr.vmem [resolvable:$true] %s308
          %314 = dma.hbm_to_vmem [thread:$0]  %s6, 1024, %s309, [#allocation12], 64, 64, 4
        $region36: #{tpu_custom_call.1} parent=11 // pred_fallthru
          _
        // Predicated region
        $region37: #{tpu_custom_call.1} parent=11 // pred_check
          %p315 = pneg %p196
        $region38: #{tpu_custom_call.1} parent=11 // pred_check_branch
          %317 = sbr.rel (%p315) target = $region40
        $region39: #{tpu_custom_call.1} parent=11 // pred_region
          _
        $region40: #{tpu_custom_call.1} parent=11 // pred_fallthru
          _
      $region12: #{tpu_custom_call.1} parent=5 // pred_fallthru
        _
      %p318 = scmp.lt.s32.totalorder %s23, 2
      // Predicated region
      $region41: #{tpu_custom_call.1} parent=5 // pred_check
        %p319 = pneg %p318
      $region42: #{tpu_custom_call.1} parent=5 // pred_check_branch
        %321 = sbr.rel (%p319) target = $region44
      $region43: #{tpu_custom_call.1} parent=5 // pred_region
        // Predicated region
        $region45: #{tpu_custom_call.1} parent=43 // pred_check
          %p322 = pneg %p43
        $region46: #{tpu_custom_call.1} parent=43 // pred_check_branch
          %324 = sbr.rel (%p322) target = $region48
        $region47: #{tpu_custom_call.1} parent=43 // pred_region
          %s325 = sand.u32 %s33, 1
          %s326 = scalar_lea.sflag [#allocation3], %s325
          %s327 = sand.u32 %s33, 1
          %s328 = smul.addr %s327, 16
          %s329 = scalar_lea.vmem [#allocation2], %s328
          %s330 = smul.u32 2, %s23
          %s332 = ssub.s32 256, 256
          %333 = vsyncadd %s326, %s332
          %s334 = smul.addr %s330, 128
          %s335 = scalar_lea.hbm %s0, %s334
          %s336 = sshll.u32 %s329, 4
          %s337 = int_to_ptr.vmem [resolvable:$true] %s336
          %342 = dma.hbm_to_vmem [thread:$0]  %s335, 256, %s337, %s326, 128, 128, 8
        $region48: #{tpu_custom_call.1} parent=43 // pred_fallthru
          _
      $region44: #{tpu_custom_call.1} parent=5 // pred_fallthru
        _
      %p343 = scmp.le.s32.totalorder 1, %s23
      %p344 = scmp.lt.s32.totalorder %s23, 3
      %p345 = pnand %p343, %p344
      %p346 = pneg %p345
      // Predicated region
      $region49: #{tpu_custom_call.1} parent=5 // pred_check
        _
      $region50: #{tpu_custom_call.1} parent=5 // pred_check_branch
        %348 = sbr.rel (%p345) target = $region52
      $region51: #{tpu_custom_call.1} parent=5 // pred_region
        %s349 = ssub.s32 %s23, 1
        %s350 = sand.u32 %s36, 1
        %s351 = scalar_lea.sflag [#allocation3], %s350
        %s352 = sand.u32 %s36, 1
        %s353 = smul.addr %s352, 16
        %s354 = scalar_lea.vmem [#allocation2], %s353
        // Predicated region
        $region53: #{tpu_custom_call.1} parent=51 // pred_check
          %p355 = pneg %p49
        $region54: #{tpu_custom_call.1} parent=51 // pred_check_branch
          %357 = sbr.rel (%p355) target = $region56
        $region55: #{tpu_custom_call.1} parent=51 // pred_region
          %358 = dma.done %s351, 256
        $region56: #{tpu_custom_call.1} parent=51 // pred_fallthru
          _
        // Predicated region
        $region57: #{tpu_custom_call.1} parent=51 // pred_check
          %p359 = pneg %p70
        $region58: #{tpu_custom_call.1} parent=51 // pred_check_branch
          %361 = sbr.rel (%p359) target = $region60
        $region59: #{tpu_custom_call.1} parent=51 // pred_region
          %362 = dma.done [#allocation6], 1024
        $region60: #{tpu_custom_call.1} parent=51 // pred_fallthru
          _
        // Predicated region
        $region61: #{tpu_custom_call.1} parent=51 // pred_check
          %p363 = pneg %p91
        $region62: #{tpu_custom_call.1} parent=51 // pred_check_branch
          %365 = sbr.rel (%p363) target = $region64
        $region63: #{tpu_custom_call.1} parent=51 // pred_region
          %366 = dma.done [#allocation6], 2048
        $region64: #{tpu_custom_call.1} parent=51 // pred_fallthru
          _
        // Predicated region
        $region65: #{tpu_custom_call.1} parent=51 // pred_check
          %p367 = pneg %p112
        $region66: #{tpu_custom_call.1} parent=51 // pred_check_branch
          %369 = sbr.rel (%p367) target = $region68
        $region67: #{tpu_custom_call.1} parent=51 // pred_region
          %370 = dma.done [#allocation9], 1024
        $region68: #{tpu_custom_call.1} parent=51 // pred_fallthru
          _
        // Predicated region
        $region69: #{tpu_custom_call.1} parent=51 // pred_check
          %p371 = pneg %p133
        $region70: #{tpu_custom_call.1} parent=51 // pred_check_branch
          %373 = sbr.rel (%p371) target = $region72
        $region71: #{tpu_custom_call.1} parent=51 // pred_region
          %374 = dma.done [#allocation9], 1024
        $region72: #{tpu_custom_call.1} parent=51 // pred_fallthru
          _
        // Predicated region
        $region73: #{tpu_custom_call.1} parent=51 // pred_check
          %p375 = pneg %p154
        $region74: #{tpu_custom_call.1} parent=51 // pred_check_branch
          %377 = sbr.rel (%p375) target = $region76
        $region75: #{tpu_custom_call.1} parent=51 // pred_region
          %378 = dma.done [#allocation12], 1024
        $region76: #{tpu_custom_call.1} parent=51 // pred_fallthru
          _
        // Predicated region
        $region77: #{tpu_custom_call.1} parent=51 // pred_check
          %p379 = pneg %p175
        $region78: #{tpu_custom_call.1} parent=51 // pred_check_branch
          %381 = sbr.rel (%p379) target = $region80
        $region79: #{tpu_custom_call.1} parent=51 // pred_region
          %382 = dma.done [#allocation12], 1024
        $region80: #{tpu_custom_call.1} parent=51 // pred_fallthru
          _
        %s383 = sand.u32 %s36, 1
        %s384 = scalar_lea.sflag [#allocation3], %s383
        %s385 = sand.u32 %s36, 1
        %s386 = smul.addr %s385, 16
        %s387 = scalar_lea.vmem [#allocation2], %s386
        %p388 = pneg %p49
        %p389 = pneg %p46
        %p390 = pneg %p70
        %p391 = pneg %p67
        %p392 = pneg %p91
        %p393 = pneg %p88
        %p394 = pneg %p112
        %p395 = pneg %p109
        %p396 = pneg %p133
        %p397 = pneg %p130
        %p398 = pneg %p154
        %p399 = pneg %p151
        %p400 = pneg %p175
        %p401 = pneg %p172
        %p402 = pneg %p196
        %p403 = pneg %p193
        %p404 = pneg %p222
        %p405 = pneg %p219
        %s406 = sand.u32 %s209, 1
        %s407 = scalar_lea.sflag [#allocation4], %s406
        %s408 = sand.u32 %s209, 1
        %s409 = smul.addr %s408, 16
        %s410 = scalar_lea.vmem [#allocation14], %s409
        %s411 = smul.u32 2, %s28
        %s412 = smul.u32 2, %s28
        %v414 = vld [vmem:[%s354] sm:$0xff]
        %v415 = vld [vmem:[%s354 + $0x8] sm:$0xff]
        %v416 = vlaneseq
        %v417 = vshrl.u32 %v416, 7
        %v418 = vadd.s32 %v417, 8
        %vm419 = vcmp.lt.s32.totalorder %v417, 0
        %v420 = vsub.s32 0, %v417
        %v421 = vsel %vm419, %v420, %v417
        %v422 = vshrl.u32 %v421, 4
        %v423 = vand.u32 %v421, 15
        %v424 = vsub.s32 0, %v423
        %v425 = vsel %vm419, %v424, %v423
        %vm426 = vcmp.lt.s32.totalorder %v418, 0
        %v427 = vsub.s32 0, %v418
        %v428 = vsel %vm426, %v427, %v418
        %v429 = vshrl.u32 %v428, 4
        %v430 = vand.u32 %v428, 15
        %v431 = vsub.s32 0, %v430
        %v432 = vsel %vm426, %v431, %v430
        %vm433 = vcmp.ne.s32.totalorder %v425, 0
        %vm434 = vcmp.ne.s32.totalorder %v432, 0
        %vm435 = vcmp.lt.s32.totalorder %v425, 0
        %vm436 = vcmp.lt.s32.totalorder %v432, 0
        %vm437 = vmand %vm435, %vm433
        %vm438 = vmand %vm436, %vm434
        %v439 = vadd.s32 %v425, 16
        %v440 = vadd.s32 %v432, 16
        %v441 = vsel %vm437, %v439, %v425
        %v442 = vsel %vm438, %v440, %v432
        %vm443 = vcmp.eq.s32.totalorder %v441, 0
        %vm444 = vcmp.eq.s32.totalorder %v442, 0
        %vm445 = vcmp.eq.s32.totalorder %v441, 15
        %vm446 = vcmp.eq.s32.totalorder %v442, 15
        %v447 = vrot.slane %v414, 7
        %v448 = vrot.slane %v415, 7
        %vm449 = vcmp.lt.s32.totalorder %v417, 1
        %v450 = vsel %vm449, %v447, %v448
        %v451 = vsel %vm449, %v448, %v447
        %v452 = vsel %vm443, 1, 0
        %v453 = vsel %vm444, 1, 0
        %vm454 = vcmp.eq.s32.totalorder %v452, 1
        %vm455 = vcmp.eq.s32.totalorder %v453, 1
        %v456 = vsel %vm454, 0.0, %v451
        %v457 = vsel %vm455, 0.0, %v450
        %v458 = vpack.c.bf16 %v457, %v456
        %v459 = vrot.slane %v414, 1
        %v460 = vrot.slane %v415, 1
        %vm461 = vcmp.lt.s32.totalorder %v417, 7
        %v462 = vsel %vm461, %v459, %v460
        %v463 = vsel %vm461, %v460, %v459
        %v464 = vsel %vm445, 1, 0
        %v465 = vsel %vm446, 1, 0
        %vm466 = vcmp.eq.s32.totalorder %v464, 1
        %vm467 = vcmp.eq.s32.totalorder %v465, 1
        %v468 = vsel %vm466, 0.0, %v462
        %v469 = vsel %vm467, 0.0, %v463
        %v470 = vpack.c.bf16 %v469, %v468
        %v471 = vpack.c.bf16 %v415, %v414
        %v472 = vld [vmem:[#allocation7] sm:$0xff]
        %v473 = vld [vmem:[#allocation7 + $0x8] sm:$0xff]
        %v474 = vld [vmem:[#allocation7 + $0x10] sm:$0xff]
        %v475 = vld [vmem:[#allocation7 + $0x18] sm:$0xff]
        %v476 = vld [vmem:[#allocation7 + $0x20] sm:$0xff]
        %v477 = vld [vmem:[#allocation7 + $0x28] sm:$0xff]
        %v478 = vld [vmem:[#allocation7 + $0x30] sm:$0xff]
        %v479 = vld [vmem:[#allocation7 + $0x38] sm:$0xff]
        %v480 = vld [vmem:[#allocation7 + $0x40] sm:$0xff]
        %v481 = vld [vmem:[#allocation7 + $0x48] sm:$0xff]
        %v482 = vld [vmem:[#allocation7 + $0x50] sm:$0xff]
        %v483 = vld [vmem:[#allocation7 + $0x58] sm:$0xff]
        %v484 = vld [vmem:[#allocation7 + $0x60] sm:$0xff]
        %v485 = vld [vmem:[#allocation7 + $0x68] sm:$0xff]
        %v486 = vld [vmem:[#allocation7 + $0x70] sm:$0xff]
        %v487 = vld [vmem:[#allocation7 + $0x78] sm:$0xff]
        %v504 = vunpack.c.l.b16 %v472
        %v505 = vunpack.c.h.b16 %v472
        %v506 = vunpack.c.l.b16 %v473
        %v507 = vunpack.c.h.b16 %v473
        %v508 = vunpack.c.l.b16 %v474
        %v509 = vunpack.c.h.b16 %v474
        %v510 = vunpack.c.l.b16 %v475
        %v511 = vunpack.c.h.b16 %v475
        %v512 = vunpack.c.l.b16 %v476
        %v513 = vunpack.c.h.b16 %v476
        %v514 = vunpack.c.l.b16 %v477
        %v515 = vunpack.c.h.b16 %v477
        %v516 = vunpack.c.l.b16 %v478
        %v517 = vunpack.c.h.b16 %v478
        %v518 = vunpack.c.l.b16 %v479
        %v519 = vunpack.c.h.b16 %v479
        %v520 = vunpack.c.l.b16 %v480
        %v521 = vunpack.c.h.b16 %v480
        %v522 = vunpack.c.l.b16 %v481
        %v523 = vunpack.c.h.b16 %v481
        %v524 = vunpack.c.l.b16 %v482
        %v525 = vunpack.c.h.b16 %v482
        %v526 = vunpack.c.l.b16 %v483
        %v527 = vunpack.c.h.b16 %v483
        %v528 = vunpack.c.l.b16 %v484
        %v529 = vunpack.c.h.b16 %v484
        %v530 = vunpack.c.l.b16 %v485
        %v531 = vunpack.c.h.b16 %v485
        %v532 = vunpack.c.l.b16 %v486
        %v533 = vunpack.c.h.b16 %v486
        %v534 = vunpack.c.l.b16 %v487
        %v535 = vunpack.c.h.b16 %v487
        %v536 = vpack.c.b16 %v506, %v504
        %v537 = vpack.c.b16 %v507, %v505
        %v538 = vpack.c.b16 %v510, %v508
        %v539 = vpack.c.b16 %v511, %v509
        %v540 = vpack.c.b16 %v514, %v512
        %v541 = vpack.c.b16 %v515, %v513
        %v542 = vpack.c.b16 %v518, %v516
        %v543 = vpack.c.b16 %v519, %v517
        %v544 = vpack.c.b16 %v522, %v520
        %v545 = vpack.c.b16 %v523, %v521
        %v546 = vpack.c.b16 %v526, %v524
        %v547 = vpack.c.b16 %v527, %v525
        %v548 = vpack.c.b16 %v530, %v528
        %v549 = vpack.c.b16 %v531, %v529
        %v550 = vpack.c.b16 %v534, %v532
        %v551 = vpack.c.b16 %v535, %v533
        %568 = vmatprep.subr.bf16.mxu0 %v537
        %569 = vmatpush1.bf16.msra.mxu0 %v536
        %570 = vmatprep.subr.bf16.mxu0 %v539
        %571 = vmatpush1.bf16.msra.mxu0 %v538
        %572 = vmatprep.subr.bf16.mxu0 %v541
        %573 = vmatpush1.bf16.msra.mxu0 %v540
        %574 = vmatprep.subr.bf16.mxu0 %v543
        %575 = vmatpush1.bf16.msra.mxu0 %v542
        %576 = vmatprep.subr.bf16.mxu0 %v545
        %577 = vmatpush1.bf16.msra.mxu0 %v544
        %578 = vmatprep.subr.bf16.mxu0 %v547
        %579 = vmatpush1.bf16.msra.mxu0 %v546
        %580 = vmatprep.subr.bf16.mxu0 %v549
        %581 = vmatpush1.bf16.msra.mxu0 %v548
        %582 = vmatprep.subr.bf16.mxu0 %v551
        %583 = vmatpush1.bf16.msra.mxu0 %v550
        %584 = vmatprep.subr.bf16.mxu0 0
        %585 = vmatpush1.bf16.msra.mxu0 0
        %586 = vmatprep.subr.bf16.mxu0 0
        %587 = vmatpush1.bf16.msra.mxu0 0
        %588 = vmatprep.subr.bf16.mxu0 0
        %589 = vmatpush1.bf16.msra.mxu0 0
        %590 = vmatprep.subr.bf16.mxu0 0
        %591 = vmatpush1.bf16.msra.mxu0 0
        %592 = vmatprep.subr.bf16.mxu0 0
        %593 = vmatpush1.bf16.msra.mxu0 0
        %594 = vmatprep.subr.bf16.mxu0 0
        %595 = vmatpush1.bf16.msra.mxu0 0
        %596 = vmatprep.subr.bf16.mxu0 0
        %597 = vmatpush1.bf16.msra.mxu0 0
        %598 = vmatprep.subr.bf16.mxu0 0
        %599 = vmatpush1.bf16.msra.mxu0 0
        %600 = vmatprep.mubr.bf16.mxu0 0
        %601 = vmatmul.mubr.bf16.gmra.mrb[0].mxu0 %v471
        %v602 = vpop.f32.mrb[0].mxu0
        %v603 = vadd.f32 0.0, %v602
        %v604 = vpop.f32.mrb[0].mxu0
        %v605 = vadd.f32 0.0, %v604
        %v606 = vpop.f32.mrb[0].mxu0
        %v607 = vadd.f32 0.0, %v606
        %v608 = vpop.f32.mrb[0].mxu0
        %v609 = vadd.f32 0.0, %v608
        %610 = vdwg.mxu0
        %v611 = vld [vmem:[#allocation5] sm:$0xf]
        %v612 = vld [vmem:[#allocation5 + $0x4] sm:$0xf]
        %v613 = vld [vmem:[#allocation5 + $0x8] sm:$0xf]
        %v614 = vld [vmem:[#allocation5 + $0xc] sm:$0xf]
        %v615 = vld [vmem:[#allocation5 + $0x10] sm:$0xf]
        %v616 = vld [vmem:[#allocation5 + $0x14] sm:$0xf]
        %v617 = vld [vmem:[#allocation5 + $0x18] sm:$0xf]
        %v618 = vld [vmem:[#allocation5 + $0x1c] sm:$0xf]
        %v619 = vld [vmem:[#allocation5 + $0x20] sm:$0xf]
        %v620 = vld [vmem:[#allocation5 + $0x24] sm:$0xf]
        %v621 = vld [vmem:[#allocation5 + $0x28] sm:$0xf]
        %v622 = vld [vmem:[#allocation5 + $0x2c] sm:$0xf]
        %v623 = vld [vmem:[#allocation5 + $0x30] sm:$0xf]
        %v624 = vld [vmem:[#allocation5 + $0x34] sm:$0xf]
        %v625 = vld [vmem:[#allocation5 + $0x38] sm:$0xf]
        %v626 = vld [vmem:[#allocation5 + $0x3c] sm:$0xf]
        %v627 = vld [vmem:[#allocation8] sm:$0xf]
        %v628 = vld [vmem:[#allocation8 + $0x4] sm:$0xf]
        %v629 = vld [vmem:[#allocation8 + $0x8] sm:$0xf]
        %v630 = vld [vmem:[#allocation8 + $0xc] sm:$0xf]
        %v631 = vld [vmem:[#allocation8 + $0x10] sm:$0xf]
        %v632 = vld [vmem:[#allocation8 + $0x14] sm:$0xf]
        %v633 = vld [vmem:[#allocation8 + $0x18] sm:$0xf]
        %v634 = vld [vmem:[#allocation8 + $0x1c] sm:$0xf]
        %v635 = vld [vmem:[#allocation8 + $0x20] sm:$0xf]
        %v636 = vld [vmem:[#allocation8 + $0x24] sm:$0xf]
        %v637 = vld [vmem:[#allocation8 + $0x28] sm:$0xf]
        %v638 = vld [vmem:[#allocation8 + $0x2c] sm:$0xf]
        %v639 = vld [vmem:[#allocation8 + $0x30] sm:$0xf]
        %v640 = vld [vmem:[#allocation8 + $0x34] sm:$0xf]
        %v641 = vld [vmem:[#allocation8 + $0x38] sm:$0xf]
        %v642 = vld [vmem:[#allocation8 + $0x3c] sm:$0xf]
        %v659 = vunpack.c.l.b16 %v627
        %v660 = vunpack.c.l.b16 %v628
        %v661 = vunpack.c.l.b16 %v629
        %v662 = vunpack.c.l.b16 %v630
        %v663 = vunpack.c.l.b16 %v631
        %v664 = vunpack.c.l.b16 %v632
        %v665 = vunpack.c.l.b16 %v633
        %v666 = vunpack.c.l.b16 %v634
        %v667 = vunpack.c.l.b16 %v635
        %v668 = vunpack.c.l.b16 %v636
        %v669 = vunpack.c.l.b16 %v637
        %v670 = vunpack.c.l.b16 %v638
        %v671 = vunpack.c.l.b16 %v639
        %v672 = vunpack.c.l.b16 %v640
        %v673 = vunpack.c.l.b16 %v641
        %v674 = vunpack.c.l.b16 %v642
        %v675 = vpack.c.b16 %v660, %v659
        %v676 = vpack.c.b16 %v662, %v661
        %v677 = vpack.c.b16 %v664, %v663
        %v678 = vpack.c.b16 %v666, %v665
        %v679 = vpack.c.b16 %v668, %v667
        %v680 = vpack.c.b16 %v670, %v669
        %v681 = vpack.c.b16 %v672, %v671
        %v682 = vpack.c.b16 %v674, %v673
        %691 = vmatprep.subr.bf16.mxu0 0
        %692 = vmatpush1.bf16.msra.mxu0 %v675
        %693 = vmatprep.subr.bf16.mxu0 0
        %694 = vmatpush1.bf16.msra.mxu0 %v676
        %695 = vmatprep.subr.bf16.mxu0 0
        %696 = vmatpush1.bf16.msra.mxu0 %v677
        %697 = vmatprep.subr.bf16.mxu0 0
        %698 = vmatpush1.bf16.msra.mxu0 %v678
        %699 = vmatprep.subr.bf16.mxu0 0
        %700 = vmatpush1.bf16.msra.mxu0 %v679
        %701 = vmatprep.subr.bf16.mxu0 0
        %702 = vmatpush1.bf16.msra.mxu0 %v680
        %703 = vmatprep.subr.bf16.mxu0 0
        %704 = vmatpush1.bf16.msra.mxu0 %v681
        %705 = vmatprep.subr.bf16.mxu0 0
        %706 = vmatpush1.bf16.msra.mxu0 %v682
        %707 = vmatprep.subr.bf16.mxu0 0
        %708 = vmatpush1.bf16.msra.mxu0 0
        %709 = vmatprep.subr.bf16.mxu0 0
        %710 = vmatpush1.bf16.msra.mxu0 0
        %711 = vmatprep.subr.bf16.mxu0 0
        %712 = vmatpush1.bf16.msra.mxu0 0
        %713 = vmatprep.subr.bf16.mxu0 0
        %714 = vmatpush1.bf16.msra.mxu0 0
        %715 = vmatprep.subr.bf16.mxu0 0
        %716 = vmatpush1.bf16.msra.mxu0 0
        %717 = vmatprep.subr.bf16.mxu0 0
        %718 = vmatpush1.bf16.msra.mxu0 0
        %719 = vmatprep.subr.bf16.mxu0 0
        %720 = vmatpush1.bf16.msra.mxu0 0
        %721 = vmatprep.subr.bf16.mxu0 0
        %722 = vmatpush1.bf16.msra.mxu0 0
        %723 = vmatprep.mubr.bf16.mxu0 0
        %724 = vmatmul.mubr.bf16.gmra.mrb[0].mxu0 %v470
        %v725 = vpop.f32.mrb[0].mxu0
        %v726 = vadd.f32 0.0, %v725
        %v727 = vpop.f32.mrb[0].mxu0
        %v728 = vpop.f32.mrb[0].mxu0
        %v729 = vadd.f32 0.0, %v728
        %v730 = vpop.f32.mrb[0].mxu0
        %731 = vdwg.mxu0
        %v748 = vunpack.c.l.b16 %v611
        %v749 = vunpack.c.l.b16 %v612
        %v750 = vunpack.c.l.b16 %v613
        %v751 = vunpack.c.l.b16 %v614
        %v752 = vunpack.c.l.b16 %v615
        %v753 = vunpack.c.l.b16 %v616
        %v754 = vunpack.c.l.b16 %v617
        %v755 = vunpack.c.l.b16 %v618
        %v756 = vunpack.c.l.b16 %v619
        %v757 = vunpack.c.l.b16 %v620
        %v758 = vunpack.c.l.b16 %v621
        %v759 = vunpack.c.l.b16 %v622
        %v760 = vunpack.c.l.b16 %v623
        %v761 = vunpack.c.l.b16 %v624
        %v762 = vunpack.c.l.b16 %v625
        %v763 = vunpack.c.l.b16 %v626
        %v764 = vpack.c.b16 %v749, %v748
        %v765 = vpack.c.b16 %v751, %v750
        %v766 = vpack.c.b16 %v753, %v752
        %v767 = vpack.c.b16 %v755, %v754
        %v768 = vpack.c.b16 %v757, %v756
        %v769 = vpack.c.b16 %v759, %v758
        %v770 = vpack.c.b16 %v761, %v760
        %v771 = vpack.c.b16 %v763, %v762
        %780 = vmatprep.subr.bf16.mxu0 0
        %781 = vmatpush1.bf16.msra.mxu0 %v764
        %782 = vmatprep.subr.bf16.mxu0 0
        %783 = vmatpush1.bf16.msra.mxu0 %v765
        %784 = vmatprep.subr.bf16.mxu0 0
        %785 = vmatpush1.bf16.msra.mxu0 %v766
        %786 = vmatprep.subr.bf16.mxu0 0
        %787 = vmatpush1.bf16.msra.mxu0 %v767
        %788 = vmatprep.subr.bf16.mxu0 0
        %789 = vmatpush1.bf16.msra.mxu0 %v768
        %790 = vmatprep.subr.bf16.mxu0 0
        %791 = vmatpush1.bf16.msra.mxu0 %v769
        %792 = vmatprep.subr.bf16.mxu0 0
        %793 = vmatpush1.bf16.msra.mxu0 %v770
        %794 = vmatprep.subr.bf16.mxu0 0
        %795 = vmatpush1.bf16.msra.mxu0 %v771
        %796 = vmatprep.subr.bf16.mxu0 0
        %797 = vmatpush1.bf16.msra.mxu0 0
        %798 = vmatprep.subr.bf16.mxu0 0
        %799 = vmatpush1.bf16.msra.mxu0 0
        %800 = vmatprep.subr.bf16.mxu0 0
        %801 = vmatpush1.bf16.msra.mxu0 0
        %802 = vmatprep.subr.bf16.mxu0 0
        %803 = vmatpush1.bf16.msra.mxu0 0
        %804 = vmatprep.subr.bf16.mxu0 0
        %805 = vmatpush1.bf16.msra.mxu0 0
        %806 = vmatprep.subr.bf16.mxu0 0
        %807 = vmatpush1.bf16.msra.mxu0 0
        %808 = vmatprep.subr.bf16.mxu0 0
        %809 = vmatpush1.bf16.msra.mxu0 0
        %810 = vmatprep.subr.bf16.mxu0 0
        %811 = vmatpush1.bf16.msra.mxu0 0
        %812 = vmatprep.mubr.bf16.mxu0 0
        %813 = vmatmul.mubr.bf16.gmra.mrb[0].mxu0 %v458
        %v814 = vpop.f32.mrb[0].mxu0
        %v815 = vadd.f32 %v726, %v814
        %v816 = vpop.f32.mrb[0].mxu0
        %v817 = vpop.f32.mrb[0].mxu0
        %v818 = vadd.f32 %v729, %v817
        %v819 = vpop.f32.mrb[0].mxu0
        %820 = vdwg.mxu0
        %v821 = vadd.f32 %v603, %v815
        %v822 = vadd.f32 %v607, %v818
        %v823 = vld [vmem:[%s7] sm:$0x1]
        %v824 = vlaneseq
        %v825 = vshrl.u32 %v824, 7
        %v826 = vsub.s32 0, %v825
        %v827 = vrot.slane %v823, %v826
        %v828 = vadd.f32 %v821, %v827
        %v829 = vadd.f32 %v822, %v827
        %v830 = vmax.f32 %v828, 0.0
        %v831 = vmax.f32 %v829, 0.0
        %v832 = vrot.slane %v830, 7
        %v833 = vrot.slane %v831, 7
        %v834 = vsel %vm449, %v832, %v833
        %v835 = vsel %vm449, %v833, %v832
        %v836 = vsel %vm454, 0.0, %v835
        %v837 = vsel %vm455, 0.0, %v834
        %v838 = vpack.c.bf16 %v837, %v836
        %v839 = vrot.slane %v830, 1
        %v840 = vrot.slane %v831, 1
        %v841 = vsel %vm461, %v839, %v840
        %v842 = vsel %vm461, %v840, %v839
        %v843 = vsel %vm466, 0.0, %v841
        %v844 = vsel %vm467, 0.0, %v842
        %v845 = vpack.c.bf16 %v844, %v843
        %v846 = vpack.c.bf16 %v831, %v830
        %v847 = vld [vmem:[#allocation11] sm:$0xf]
        %v848 = vld [vmem:[#allocation11 + $0x4] sm:$0xf]
        %v849 = vld [vmem:[#allocation11 + $0x8] sm:$0xf]
        %v850 = vld [vmem:[#allocation11 + $0xc] sm:$0xf]
        %v851 = vld [vmem:[#allocation11 + $0x10] sm:$0xf]
        %v852 = vld [vmem:[#allocation11 + $0x14] sm:$0xf]
        %v853 = vld [vmem:[#allocation11 + $0x18] sm:$0xf]
        %v854 = vld [vmem:[#allocation11 + $0x1c] sm:$0xf]
        %v855 = vld [vmem:[#allocation11 + $0x20] sm:$0xf]
        %v856 = vld [vmem:[#allocation11 + $0x24] sm:$0xf]
        %v857 = vld [vmem:[#allocation11 + $0x28] sm:$0xf]
        %v858 = vld [vmem:[#allocation11 + $0x2c] sm:$0xf]
        %v859 = vld [vmem:[#allocation11 + $0x30] sm:$0xf]
        %v860 = vld [vmem:[#allocation11 + $0x34] sm:$0xf]
        %v861 = vld [vmem:[#allocation11 + $0x38] sm:$0xf]
        %v862 = vld [vmem:[#allocation11 + $0x3c] sm:$0xf]
        %v863 = vld [vmem:[#allocation10] sm:$0xf]
        %v864 = vld [vmem:[#allocation10 + $0x4] sm:$0xf]
        %v865 = vld [vmem:[#allocation10 + $0x8] sm:$0xf]
        %v866 = vld [vmem:[#allocation10 + $0xc] sm:$0xf]
        %v867 = vld [vmem:[#allocation10 + $0x10] sm:$0xf]
        %v868 = vld [vmem:[#allocation10 + $0x14] sm:$0xf]
        %v869 = vld [vmem:[#allocation10 + $0x18] sm:$0xf]
        %v870 = vld [vmem:[#allocation10 + $0x1c] sm:$0xf]
        %v871 = vld [vmem:[#allocation10 + $0x20] sm:$0xf]
        %v872 = vld [vmem:[#allocation10 + $0x24] sm:$0xf]
        %v873 = vld [vmem:[#allocation10 + $0x28] sm:$0xf]
        %v874 = vld [vmem:[#allocation10 + $0x2c] sm:$0xf]
        %v875 = vld [vmem:[#allocation10 + $0x30] sm:$0xf]
        %v876 = vld [vmem:[#allocation10 + $0x34] sm:$0xf]
        %v877 = vld [vmem:[#allocation10 + $0x38] sm:$0xf]
        %v878 = vld [vmem:[#allocation10 + $0x3c] sm:$0xf]
        %v879 = vld [vmem:[#allocation13] sm:$0xf]
        %v880 = vld [vmem:[#allocation13 + $0x4] sm:$0xf]
        %v881 = vld [vmem:[#allocation13 + $0x8] sm:$0xf]
        %v882 = vld [vmem:[#allocation13 + $0xc] sm:$0xf]
        %v883 = vld [vmem:[#allocation13 + $0x10] sm:$0xf]
        %v884 = vld [vmem:[#allocation13 + $0x14] sm:$0xf]
        %v885 = vld [vmem:[#allocation13 + $0x18] sm:$0xf]
        %v886 = vld [vmem:[#allocation13 + $0x1c] sm:$0xf]
        %v887 = vld [vmem:[#allocation13 + $0x20] sm:$0xf]
        %v888 = vld [vmem:[#allocation13 + $0x24] sm:$0xf]
        %v889 = vld [vmem:[#allocation13 + $0x28] sm:$0xf]
        %v890 = vld [vmem:[#allocation13 + $0x2c] sm:$0xf]
        %v891 = vld [vmem:[#allocation13 + $0x30] sm:$0xf]
        %v892 = vld [vmem:[#allocation13 + $0x34] sm:$0xf]
        %v893 = vld [vmem:[#allocation13 + $0x38] sm:$0xf]
        %v894 = vld [vmem:[#allocation13 + $0x3c] sm:$0xf]
        %v911 = vunpack.c.l.b16 %v879
        %v912 = vunpack.c.l.b16 %v880
        %v913 = vunpack.c.l.b16 %v881
        %v914 = vunpack.c.l.b16 %v882
        %v915 = vunpack.c.l.b16 %v883
        %v916 = vunpack.c.l.b16 %v884
        %v917 = vunpack.c.l.b16 %v885
        %v918 = vunpack.c.l.b16 %v886
        %v919 = vunpack.c.l.b16 %v887
        %v920 = vunpack.c.l.b16 %v888
        %v921 = vunpack.c.l.b16 %v889
        %v922 = vunpack.c.l.b16 %v890
        %v923 = vunpack.c.l.b16 %v891
        %v924 = vunpack.c.l.b16 %v892
        %v925 = vunpack.c.l.b16 %v893
        %v926 = vunpack.c.l.b16 %v894
        %v927 = vpack.c.b16 %v912, %v911
        %v928 = vpack.c.b16 %v914, %v913
        %v929 = vpack.c.b16 %v916, %v915
        %v930 = vpack.c.b16 %v918, %v917
        %v931 = vpack.c.b16 %v920, %v919
        %v932 = vpack.c.b16 %v922, %v921
        %v933 = vpack.c.b16 %v924, %v923
        %v934 = vpack.c.b16 %v926, %v925
        %943 = vmatprep.subr.bf16.mxu0 0
        %944 = vmatpush1.bf16.msra.mxu0 %v927
        %945 = vmatprep.subr.bf16.mxu0 0
        %946 = vmatpush1.bf16.msra.mxu0 %v928
        %947 = vmatprep.subr.bf16.mxu0 0
        %948 = vmatpush1.bf16.msra.mxu0 %v929
        %949 = vmatprep.subr.bf16.mxu0 0
        %950 = vmatpush1.bf16.msra.mxu0 %v930
        %951 = vmatprep.subr.bf16.mxu0 0
        %952 = vmatpush1.bf16.msra.mxu0 %v931
        %953 = vmatprep.subr.bf16.mxu0 0
        %954 = vmatpush1.bf16.msra.mxu0 %v932
        %955 = vmatprep.subr.bf16.mxu0 0
        %956 = vmatpush1.bf16.msra.mxu0 %v933
        %957 = vmatprep.subr.bf16.mxu0 0
        %958 = vmatpush1.bf16.msra.mxu0 %v934
        %959 = vmatprep.subr.bf16.mxu0 0
        %960 = vmatpush1.bf16.msra.mxu0 0
        %961 = vmatprep.subr.bf16.mxu0 0
        %962 = vmatpush1.bf16.msra.mxu0 0
        %963 = vmatprep.subr.bf16.mxu0 0
        %964 = vmatpush1.bf16.msra.mxu0 0
        %965 = vmatprep.subr.bf16.mxu0 0
        %966 = vmatpush1.bf16.msra.mxu0 0
        %967 = vmatprep.subr.bf16.mxu0 0
        %968 = vmatpush1.bf16.msra.mxu0 0
        %969 = vmatprep.subr.bf16.mxu0 0
        %970 = vmatpush1.bf16.msra.mxu0 0
        %971 = vmatprep.subr.bf16.mxu0 0
        %972 = vmatpush1.bf16.msra.mxu0 0
        %973 = vmatprep.subr.bf16.mxu0 0
        %974 = vmatpush1.bf16.msra.mxu0 0
        %975 = vmatprep.mubr.bf16.mxu0 0
        %976 = vmatmul.mubr.bf16.gmra.mrb[0].mxu0 %v845
        %v977 = vpop.f32.mrb[0].mxu0
        %v978 = vadd.f32 0.0, %v977
        %v979 = vpop.f32.mrb[0].mxu0
        %v980 = vpop.f32.mrb[0].mxu0
        %v981 = vadd.f32 0.0, %v980
        %v982 = vpop.f32.mrb[0].mxu0
        %983 = vdwg.mxu0
        %v1000 = vunpack.c.l.b16 %v863
        %v1001 = vunpack.c.l.b16 %v864
        %v1002 = vunpack.c.l.b16 %v865
        %v1003 = vunpack.c.l.b16 %v866
        %v1004 = vunpack.c.l.b16 %v867
        %v1005 = vunpack.c.l.b16 %v868
        %v1006 = vunpack.c.l.b16 %v869
        %v1007 = vunpack.c.l.b16 %v870
        %v1008 = vunpack.c.l.b16 %v871
        %v1009 = vunpack.c.l.b16 %v872
        %v1010 = vunpack.c.l.b16 %v873
        %v1011 = vunpack.c.l.b16 %v874
        %v1012 = vunpack.c.l.b16 %v875
        %v1013 = vunpack.c.l.b16 %v876
        %v1014 = vunpack.c.l.b16 %v877
        %v1015 = vunpack.c.l.b16 %v878
        %v1016 = vpack.c.b16 %v1001, %v1000
        %v1017 = vpack.c.b16 %v1003, %v1002
        %v1018 = vpack.c.b16 %v1005, %v1004
        %v1019 = vpack.c.b16 %v1007, %v1006
        %v1020 = vpack.c.b16 %v1009, %v1008
        %v1021 = vpack.c.b16 %v1011, %v1010
        %v1022 = vpack.c.b16 %v1013, %v1012
        %v1023 = vpack.c.b16 %v1015, %v1014
        %1032 = vmatprep.subr.bf16.mxu0 0
        %1033 = vmatpush1.bf16.msra.mxu0 %v1016
        %1034 = vmatprep.subr.bf16.mxu0 0
        %1035 = vmatpush1.bf16.msra.mxu0 %v1017
        %1036 = vmatprep.subr.bf16.mxu0 0
        %1037 = vmatpush1.bf16.msra.mxu0 %v1018
        %1038 = vmatprep.subr.bf16.mxu0 0
        %1039 = vmatpush1.bf16.msra.mxu0 %v1019
        %1040 = vmatprep.subr.bf16.mxu0 0
        %1041 = vmatpush1.bf16.msra.mxu0 %v1020
        %1042 = vmatprep.subr.bf16.mxu0 0
        %1043 = vmatpush1.bf16.msra.mxu0 %v1021
        %1044 = vmatprep.subr.bf16.mxu0 0
        %1045 = vmatpush1.bf16.msra.mxu0 %v1022
        %1046 = vmatprep.subr.bf16.mxu0 0
        %1047 = vmatpush1.bf16.msra.mxu0 %v1023
        %1048 = vmatprep.subr.bf16.mxu0 0
        %1049 = vmatpush1.bf16.msra.mxu0 0
        %1050 = vmatprep.subr.bf16.mxu0 0
        %1051 = vmatpush1.bf16.msra.mxu0 0
        %1052 = vmatprep.subr.bf16.mxu0 0
        %1053 = vmatpush1.bf16.msra.mxu0 0
        %1054 = vmatprep.subr.bf16.mxu0 0
        %1055 = vmatpush1.bf16.msra.mxu0 0
        %1056 = vmatprep.subr.bf16.mxu0 0
        %1057 = vmatpush1.bf16.msra.mxu0 0
        %1058 = vmatprep.subr.bf16.mxu0 0
        %1059 = vmatpush1.bf16.msra.mxu0 0
        %1060 = vmatprep.subr.bf16.mxu0 0
        %1061 = vmatpush1.bf16.msra.mxu0 0
        %1062 = vmatprep.subr.bf16.mxu0 0
        %1063 = vmatpush1.bf16.msra.mxu0 0
        %1064 = vmatprep.mubr.bf16.mxu0 0
        %1065 = vmatmul.mubr.bf16.gmra.mrb[0].mxu0 %v838
        %v1066 = vpop.f32.mrb[0].mxu0
        %v1067 = vadd.f32 %v978, %v1066
        %v1068 = vpop.f32.mrb[0].mxu0
        %v1069 = vpop.f32.mrb[0].mxu0
        %v1070 = vadd.f32 %v981, %v1069
        %v1071 = vpop.f32.mrb[0].mxu0
        %1072 = vdwg.mxu0
        %v1089 = vunpack.c.l.b16 %v847
        %v1090 = vunpack.c.l.b16 %v848
        %v1091 = vunpack.c.l.b16 %v849
        %v1092 = vunpack.c.l.b16 %v850
        %v1093 = vunpack.c.l.b16 %v851
        %v1094 = vunpack.c.l.b16 %v852
        %v1095 = vunpack.c.l.b16 %v853
        %v1096 = vunpack.c.l.b16 %v854
        %v1097 = vunpack.c.l.b16 %v855
        %v1098 = vunpack.c.l.b16 %v856
        %v1099 = vunpack.c.l.b16 %v857
        %v1100 = vunpack.c.l.b16 %v858
        %v1101 = vunpack.c.l.b16 %v859
        %v1102 = vunpack.c.l.b16 %v860
        %v1103 = vunpack.c.l.b16 %v861
        %v1104 = vunpack.c.l.b16 %v862
        %v1105 = vpack.c.b16 %v1090, %v1089
        %v1106 = vpack.c.b16 %v1092, %v1091
        %v1107 = vpack.c.b16 %v1094, %v1093
        %v1108 = vpack.c.b16 %v1096, %v1095
        %v1109 = vpack.c.b16 %v1098, %v1097
        %v1110 = vpack.c.b16 %v1100, %v1099
        %v1111 = vpack.c.b16 %v1102, %v1101
        %v1112 = vpack.c.b16 %v1104, %v1103
        %1121 = vmatprep.subr.bf16.mxu0 0
        %1122 = vmatpush1.bf16.msra.mxu0 %v1105
        %1123 = vmatprep.subr.bf16.mxu0 0
        %1124 = vmatpush1.bf16.msra.mxu0 %v1106
        %1125 = vmatprep.subr.bf16.mxu0 0
        %1126 = vmatpush1.bf16.msra.mxu0 %v1107
        %1127 = vmatprep.subr.bf16.mxu0 0
        %1128 = vmatpush1.bf16.msra.mxu0 %v1108
        %1129 = vmatprep.subr.bf16.mxu0 0
        %1130 = vmatpush1.bf16.msra.mxu0 %v1109
        %1131 = vmatprep.subr.bf16.mxu0 0
        %1132 = vmatpush1.bf16.msra.mxu0 %v1110
        %1133 = vmatprep.subr.bf16.mxu0 0
        %1134 = vmatpush1.bf16.msra.mxu0 %v1111
        %1135 = vmatprep.subr.bf16.mxu0 0
        %1136 = vmatpush1.bf16.msra.mxu0 %v1112
        %1137 = vmatprep.subr.bf16.mxu0 0
        %1138 = vmatpush1.bf16.msra.mxu0 0
        %1139 = vmatprep.subr.bf16.mxu0 0
        %1140 = vmatpush1.bf16.msra.mxu0 0
        %1141 = vmatprep.subr.bf16.mxu0 0
        %1142 = vmatpush1.bf16.msra.mxu0 0
        %1143 = vmatprep.subr.bf16.mxu0 0
        %1144 = vmatpush1.bf16.msra.mxu0 0
        %1145 = vmatprep.subr.bf16.mxu0 0
        %1146 = vmatpush1.bf16.msra.mxu0 0
        %1147 = vmatprep.subr.bf16.mxu0 0
        %1148 = vmatpush1.bf16.msra.mxu0 0
        %1149 = vmatprep.subr.bf16.mxu0 0
        %1150 = vmatpush1.bf16.msra.mxu0 0
        %1151 = vmatprep.subr.bf16.mxu0 0
        %1152 = vmatpush1.bf16.msra.mxu0 0
        %1153 = vmatprep.mubr.bf16.mxu0 0
        %1154 = vmatmul.mubr.bf16.gmra.mrb[0].mxu0 %v846
        %v1155 = vpop.f32.mrb[0].mxu0
        %v1156 = vadd.f32 %v1067, %v1155
        %v1157 = vpop.f32.mrb[0].mxu0
        %v1158 = vpop.f32.mrb[0].mxu0
        %v1159 = vadd.f32 %v1070, %v1158
        %v1160 = vpop.f32.mrb[0].mxu0
        %1161 = vdwg.mxu0
        %v1162 = vadd.f32 %v1156, %v605
        %v1163 = vadd.f32 %v1159, %v609
        %v1164 = vld [vmem:[%s7 + $0x1] sm:$0x1]
        %v1165 = vlaneseq
        %v1166 = vshrl.u32 %v1165, 7
        %v1167 = vsub.s32 0, %v1166
        %v1168 = vrot.slane %v1164, %v1167
        %v1169 = vadd.f32 %v1162, %v1168
        %v1170 = vadd.f32 %v1163, %v1168
        %v1171 = vmax.f32 %v1169, 0.0
        %v1172 = vmax.f32 %v1170, 0.0
        %1173 = vst [vmem:[%s410] sm:$0xff] %v1171
        %1174 = vst [vmem:[%s410 + $0x8] sm:$0xff] %v1172
        %s1175 = sand.u32 %s209, 1
        %s1176 = scalar_lea.sflag [#allocation4], %s1175
        %s1177 = sand.u32 %s209, 1
        %s1178 = smul.addr %s1177, 16
        %s1179 = scalar_lea.vmem [#allocation14], %s1178
        // Predicated region
        $region81: #{tpu_custom_call.1} parent=51 // pred_check
          %p1180 = pneg %p219
        $region82: #{tpu_custom_call.1} parent=51 // pred_check_branch
          %1182 = sbr.rel (%p1180) target = $region84
        $region83: #{tpu_custom_call.1} parent=51 // pred_region
          %s1183 = smul.u32 2, %s28
          %s1185 = ssub.s32 256, 256
          %1186 = vsyncadd %s1176, %s1185
          %s1187 = smul.addr %s1183, 128
          %s1188 = scalar_lea.hbm %s8, %s1187
          %s1189 = sshll.u32 %s1179, 4
          %s1190 = int_to_ptr.vmem [resolvable:$true] %s1189
          %1195 = dma.vmem_to_hbm [thread:$0]  %s1190, 256, %s1188, %s1176, 128, 128, 8
        $region84: #{tpu_custom_call.1} parent=51 // pred_fallthru
          _
      $region52: #{tpu_custom_call.1} parent=5 // pred_fallthru
        _
      %p1196 = scmp.le.s32.totalorder 2, %s23
      // Predicated region
      $region85: #{tpu_custom_call.1} parent=5 // pred_check
        %p1197 = pneg %p1196
      $region86: #{tpu_custom_call.1} parent=5 // pred_check_branch
        %1199 = sbr.rel (%p1197) target = $region88
      $region87: #{tpu_custom_call.1} parent=5 // pred_region
        %s1200 = ssub.s32 %s23, 2
        // Predicated region
        $region89: #{tpu_custom_call.1} parent=87 // pred_check
          %p1201 = pneg %p225
        $region90: #{tpu_custom_call.1} parent=87 // pred_check_branch
          %1203 = sbr.rel (%p1201) target = $region92
        $region91: #{tpu_custom_call.1} parent=87 // pred_region
          %s1204 = sand.u32 %s210, 1
          %s1205 = scalar_lea.sflag [#allocation4], %s1204
          %s1206 = sand.u32 %s210, 1
          %s1207 = smul.addr %s1206, 16
          %s1208 = scalar_lea.vmem [#allocation14], %s1207
          %1209 = dma.done %s1205, 256
        $region92: #{tpu_custom_call.1} parent=87 // pred_fallthru
          _
      $region88: #{tpu_custom_call.1} parent=5 // pred_fallthru
        _
    $region6: #{tpu_custom_call.1} parent=1 // loop_footer
      %s27 = sadd.s32 1, %s23
    $region7: #{tpu_custom_call.1} parent=1 // loop_footer_branch
      %22 = sbr.rel target = $region3
    $region8: #{tpu_custom_call.1} parent=1 // loop_exit
      _
    %1210 = vsyncpa [#allocation3], 1
    %s1211 = scalar_lea.sflag [#allocation3], 1
    %1212 = vsyncpa %s1211, 1
    %1213 = vsyncpa [#allocation6], 1
    %1214 = vsyncpa [#allocation9], 1
    %1215 = vsyncpa [#allocation12], 1
    %1216 = vsyncpa [#allocation4], 1
    %s1217 = scalar_lea.sflag [#allocation4], 1
    %1218 = vsyncpa %s1217, 1

</llo_original>
